<compile_context>
chip_gen: v7x
topology: tpu7x:2x2x1
jax: 0.10.0
libtpu: 0.0.40
codegen_flags: <defaults>
</compile_context>

<pallas_src>
import functools

import jax
import jax.numpy as jnp
from jax import lax
from jax.experimental import pallas as pl
from jax.experimental.pallas import tpu as pltpu

LN_EPS = 1e-12  # BERT default layer-norm eps


def _round_up(x: int, m: int) -> int:
    return ((x + m - 1) // m) * m


def _cdiv(a: int, b: int) -> int:
    return (a + b - 1) // b


def _pick_chunk(ts: int) -> int:
    """Rows gathered per in-step pipeline stage (multiple of 16, divides TS)."""
    for cs in (128, 64, 32, 16):
        if ts % cs == 0:
            return cs
    return ts


def _choose_tile(S: int, B: int, H: int, tok_bytes: int, pos_bytes: int,
                 out_bytes: int, max_tile: int = 512) -> int:
    """Sequence-tile length: multiple of 16, VMEM-aware, >=2 grid steps."""
    step = 16  # sublane granularity safe for bf16 streams
    bytes_per_row = H * (tok_bytes + 3 * pos_bytes + 2 * out_bytes)
    cap = max(step, min(max_tile, ((24 << 20) // max(bytes_per_row, 1)) // step * step))
    if S <= cap:
        ts = _round_up(S, step)
    else:
        ts = next((t for t in range(cap, step - 1, -step) if S % t == 0), cap)
    # v7x has 2 TensorCores per chip: make sure the parallel grid has >= 2 steps.
    if B * _cdiv(S, ts) < 2 and S > step:
        ts = _round_up(_cdiv(S, 2), step)
    return ts


def _embed_ln_kernel(*refs, seq_pad, TS, CS, gather_pos):
    """One grid step = one (seq-tile, batch-row) pair.

    Refs (gather_pos=False):
      ids_ref (SMEM (B*seq_pad,)), tok_hbm (ANY (V,H)), pos_tile_ref (VMEM (TS,H)),
      gamma_ref (1,H), beta_ref (1,H), out_ref (TS,H),
      tok_buf (VMEM (TS,H) scratch), sems (DMA (2,2)).
    Refs (gather_pos=True): adds pos_ids_ref (SMEM) after ids_ref, pos table as
      ANY ref, and a pos_buf (VMEM (TS,H)) scratch.
    """
    if gather_pos:
        (ids_ref, pos_ids_ref, tok_hbm, pos_hbm, gamma_ref, beta_ref,
         out_ref, tok_buf, pos_buf, sems) = refs
        pos_tile_ref = None
    else:
        (ids_ref, tok_hbm, pos_tile_ref, gamma_ref, beta_ref,
         out_ref, tok_buf, sems) = refs
        pos_ids_ref = pos_hbm = pos_buf = None

    s = pl.program_id(0)           # sequence-tile index (outer grid axis)
    b = pl.program_id(1)           # batch index (inner grid axis)
    base = b * seq_pad + s * TS    # flat offset into the padded id vectors
    n_chunks = TS // CS

    def issue_chunk(c):            # c is a Python int -> fully static structure
        lo = c * CS
        slot = c % 2

        @pl.loop(0, CS)
        def _(i):
            row = base + lo + i
            tid = ids_ref[row]
            pltpu.make_async_copy(tok_hbm.at[tid], tok_buf.at[lo + i],
                                  sems.at[0, slot]).start()
            if gather_pos:
                pid = pos_ids_ref[row]
                pltpu.make_async_copy(pos_hbm.at[pid], pos_buf.at[lo + i],
                                      sems.at[1, slot]).start()

    def wait_chunk(c):
        lo = c * CS
        slot = c % 2

        # Per-row waits with descriptors matching the issued copies (same shape,
        # same semaphore).  All CS waits complete before the chunk is read.
        @pl.loop(0, CS)
        def _(i):
            pltpu.make_async_copy(tok_hbm.at[0], tok_buf.at[lo + i],
                                  sems.at[0, slot]).wait()
            if gather_pos:
                pltpu.make_async_copy(pos_hbm.at[0], pos_buf.at[lo + i],
                                      sems.at[1, slot]).wait()

    gamma = gamma_ref[...]         # (1, H) f32, hoisted out of the chunk loop
    beta = beta_ref[...]

    issue_chunk(0)
    for c in range(n_chunks):
        if c + 1 < n_chunks:
            issue_chunk(c + 1)     # overlap next chunk's gather with this compute
        wait_chunk(c)

        lo = c * CS
        x = tok_buf[pl.ds(lo, CS), :].astype(jnp.float32)            # (CS, H)
        if gather_pos:
            x = x + pos_buf[pl.ds(lo, CS), :].astype(jnp.float32)
        else:
            x = x + pos_tile_ref[pl.ds(lo, CS), :].astype(jnp.float32)

        # Two-pass LayerNorm statistics in f32 (compute hidden under DMA).
        mean = jnp.mean(x, axis=-1, keepdims=True)
        xc = x - mean
        var = jnp.mean(xc * xc, axis=-1, keepdims=True)
        y = xc * lax.rsqrt(var + LN_EPS) * gamma + beta

        # TODO(synk): dropout omitted (eval mode / p = 0 -> identity).
        out_ref[pl.ds(lo, CS), :] = y.astype(out_ref.dtype)


@functools.partial(jax.jit, static_argnames=("seq_tile", "out_dtype"))
def flexbert_embeddings(input_ids, tok_emb, pos_emb_table, ln_gamma, ln_beta,
                        position_ids=None, *, seq_tile=512, out_dtype=jnp.bfloat16):
    """input_ids: (B, S) int32.  Returns (B, S, H) in `out_dtype` (default bf16)."""
    B, S = input_ids.shape
    V, H = tok_emb.shape
    P = pos_emb_table.shape[0]

    tok_bytes = jnp.dtype(tok_emb.dtype).itemsize
    pos_bytes = jnp.dtype(pos_emb_table.dtype).itemsize
    out_bytes = jnp.dtype(out_dtype).itemsize

    TS = _choose_tile(S, B, H, tok_bytes, pos_bytes, out_bytes, max_tile=seq_tile)
    nS = _cdiv(S, TS)
    seq_pad = nS * TS
    CS = _pick_chunk(TS)
    gather_pos = position_ids is not None

    # Clamp ids to valid rows (jnp.take-style semantics; an out-of-range id would
    # otherwise trip the DMA bounds check) and pad the sequence to nS*TS so the
    # in-kernel gather never reads out-of-range SMEM ids.  The OUTPUT is not
    # padded: the last sequence block may overhang and Pallas masks its writeback.
    # TODO(synk): nn.Embedding raises on out-of-range ids and supports padding_idx;
    #             neither semantic is reproduced here.
    ids = jnp.clip(input_ids.astype(jnp.int32), 0, V - 1)
    if seq_pad != S:
        ids = jnp.pad(ids, ((0, 0), (0, seq_pad - S)))
    ids_flat = ids.reshape(-1)

    gamma2d = ln_gamma.reshape(1, H).astype(jnp.float32)
    beta2d = ln_beta.reshape(1, H).astype(jnp.float32)

    kernel = functools.partial(_embed_ln_kernel, seq_pad=seq_pad, TS=TS, CS=CS,
                               gather_pos=gather_pos)

    any_spec = pl.BlockSpec(memory_space=pl.ANY)
    gb_spec = pl.BlockSpec((1, H), lambda s, b, *_: (0, 0))          # resident
    out_spec = pl.BlockSpec((None, TS, H), lambda s, b, *_: (b, s, 0))

    vmem = TS * H * tok_bytes + 2 * TS * H * out_bytes               # scratch + out stream

    if gather_pos:
        pids = jnp.clip(position_ids.astype(jnp.int32), 0, P - 1)
        if seq_pad != S:
            pids = jnp.pad(pids, ((0, 0), (0, seq_pad - S)))
        pids_flat = pids.reshape(-1)

        num_prefetch = 2
        call_args = (ids_flat, pids_flat, tok_emb, pos_emb_table, gamma2d, beta2d)
        in_specs = [any_spec, any_spec, gb_spec, gb_spec]
        scratch = [pltpu.VMEM((TS, H), tok_emb.dtype),
                   pltpu.VMEM((TS, H), pos_emb_table.dtype),
                   pltpu.SemaphoreType.DMA((2, 2))]
        vmem += TS * H * pos_bytes
    else:
        # Default arange positions: stream (TS, H) slices of the table; with the
        # batch axis innermost the slice's block index is unchanged across the
        # batch so Pallas keeps it VMEM-resident instead of re-DMAing it.
        num_prefetch = 1
        call_args = (ids_flat, tok_emb, pos_emb_table, gamma2d, beta2d)
        in_specs = [any_spec,
                    pl.BlockSpec((TS, H), lambda s, b, *_: (s, 0)),
                    gb_spec, gb_spec]
        scratch = [pltpu.VMEM((TS, H), tok_emb.dtype),
                   pltpu.SemaphoreType.DMA((2, 2))]
        vmem += 2 * TS * H * pos_bytes

    # Explicit VMEM budget with headroom, capped well under v7x's 64 MiB per TC.
    vmem_limit = int(min(48 << 20, max(16 << 20, vmem + (8 << 20))))

    return pl.pallas_call(
        kernel,
        out_shape=jax.ShapeDtypeStruct((B, S, H), out_dtype),
        grid_spec=pltpu.PrefetchScalarGridSpec(
            num_scalar_prefetch=num_prefetch,
            grid=(nS, B),                       # seq-tiles outer, batch inner
            in_specs=in_specs,
            out_specs=out_spec,
            scratch_shapes=scratch),
        compiler_params=pltpu.CompilerParams(
            dimension_semantics=("parallel", "parallel"),
            vmem_limit_bytes=vmem_limit),
    )(*call_args)


def _reference(input_ids, tok_emb, pos_emb_table, ln_gamma, ln_beta, position_ids=None):
    B, S = input_ids.shape
    if position_ids is None:
        position_ids = jnp.broadcast_to(jnp.arange(S, dtype=jnp.int32)[None, :], (B, S))
    x = tok_emb[input_ids] + pos_emb_table[position_ids]
    mean = jnp.mean(x, axis=-1, keepdims=True)
    var = jnp.mean((x - mean) ** 2, axis=-1, keepdims=True)
    return (x - mean) / jnp.sqrt(var + LN_EPS) * ln_gamma + ln_beta


if __name__ == "__main__":
    key = jax.random.PRNGKey(0)
    k_tok, k_pos, k_ids, k_pids = jax.random.split(key, 4)

    B, S, H = 2, 8, 128
    VOCAB, MAX_POS = 64, 32

    tok_emb = jax.random.normal(k_tok, (VOCAB, H), dtype=jnp.float32) * 0.02
    pos_tab = jax.random.normal(k_pos, (MAX_POS, H), dtype=jnp.float32) * 0.02
    ln_gamma = jnp.ones((H,), dtype=jnp.float32)
    ln_beta = jnp.zeros((H,), dtype=jnp.float32)
    input_ids = jax.random.randint(k_ids, (B, S), 0, VOCAB, dtype=jnp.int32)

    # Default (position_ids=None) path, f32 output for a tight numerical check.
    out = flexbert_embeddings(input_ids, tok_emb, pos_tab, ln_gamma, ln_beta,
                              out_dtype=jnp.float32)
    out = jax.block_until_ready(out)
    ref = _reference(input_ids, tok_emb, pos_tab, ln_gamma, ln_beta)
    assert out.shape == (B, S, H), out.shape
    assert jnp.allclose(out, ref, atol=3e-5, rtol=3e-5), float(jnp.max(jnp.abs(out - ref)))

    # Explicit position_ids path (fused position gather), f32 output.
    position_ids = jax.random.randint(k_pids, (B, S), 0, MAX_POS, dtype=jnp.int32)
    out2 = flexbert_embeddings(input_ids, tok_emb, pos_tab, ln_gamma, ln_beta,
                               position_ids=position_ids, out_dtype=jnp.float32)
    out2 = jax.block_until_ready(out2)
    ref2 = _reference(input_ids, tok_emb, pos_tab, ln_gamma, ln_beta, position_ids)
    assert jnp.allclose(out2, ref2, atol=3e-5, rtol=3e-5), float(jnp.max(jnp.abs(out2 - ref2)))

    # Default bf16 output path (what a bf16 downstream encoder would consume).
    out3 = jax.block_until_ready(
        flexbert_embeddings(input_ids, tok_emb, pos_tab, ln_gamma, ln_beta))
    assert out3.dtype == jnp.bfloat16
    assert jnp.allclose(out3.astype(jnp.float32), ref, atol=5e-2, rtol=5e-2)

    print("KERNEL_OK")
</pallas_src>

<mosaic_0001>
module attributes {stable_mosaic.version = 11 : i64} {
  func.func @_embed_ln_kernel(%arg0: i32, %arg1: i32, %arg2: memref<32xi32, #tpu.memory_space<smem>>, %arg3: memref<64x128xf32, #tpu.memory_space<any>>, %arg4: memref<16x128xf32, #tpu.memory_space<vmem>>, %arg5: memref<1x128xf32, #tpu.memory_space<vmem>>, %arg6: memref<1x128xf32, #tpu.memory_space<vmem>>, %arg7: memref<1x16x128xf32, #tpu.memory_space<vmem>>, %arg8: memref<16x128xf32, #tpu.memory_space<vmem>>, %arg9: memref<2x2x!tpu.dma_semaphore, #tpu.memory_space<semaphore_mem>>) attributes {dimension_semantics = [#tpu.dimension_semantics<parallel>, #tpu.dimension_semantics<parallel>], iteration_bounds = array<i64: 1, 2>, scalar_prefetch = 1 : i64, scratch_operands = 2 : i64, tpu.core_type = #tpu.core_type<tc>, window_params = [{}, {transform_indices = @transform_1, window_bounds = array<i64: 16, 128>}, {pipeline_mode = #tpu.pipeline_mode<synchronous>, transform_indices = @transform_2, window_bounds = array<i64: 1, 128>}, {pipeline_mode = #tpu.pipeline_mode<synchronous>, transform_indices = @transform_3, window_bounds = array<i64: 1, 128>}, {transform_indices = @transform_4, window_bounds = array<i64: 1, 16, 128>}]} {
    %c16_i32 = arith.constant 16 : i32
    %0 = arith.muli %arg1, %c16_i32 : i32
    %c16_i32_0 = arith.constant 16 : i32
    %1 = arith.muli %arg0, %c16_i32_0 : i32
    %2 = arith.addi %0, %1 : i32
    %c0 = arith.constant 0 : index
    %c0_1 = arith.constant 0 : index
    %3 = vector.load %arg5[%c0, %c0_1] : memref<1x128xf32, #tpu.memory_space<vmem>>, vector<1x128xf32>
    %c0_2 = arith.constant 0 : index
    %c0_3 = arith.constant 0 : index
    %4 = vector.load %arg6[%c0_2, %c0_3] : memref<1x128xf32, #tpu.memory_space<vmem>>, vector<1x128xf32>
    %c0_i32 = arith.constant 0 : i32
    %c16_i32_4 = arith.constant 16 : i32
    %5 = arith.addi %c0_i32, %c16_i32_4 : i32
    %c1_i32 = arith.constant 1 : i32
    scf.for %arg10 = %c0_i32 to %5 step %c1_i32  : i32 {
      %c1_i32_21 = arith.constant 1 : i32
      %33 = arith.muli %arg10, %c1_i32_21 : i32
      %c0_i32_22 = arith.constant 0 : i32
      %34 = arith.addi %c0_i32_22, %33 : i32
      %c0_i32_23 = arith.constant 0 : i32
      %35 = arith.addi %2, %c0_i32_23 : i32
      %36 = arith.addi %35, %34 : i32
      %37 = arith.index_cast %36 : i32 to index
      %38 = memref.load %arg2[%37] : memref<32xi32, #tpu.memory_space<smem>>
      %c0_i32_24 = arith.constant 0 : i32
      %39 = arith.addi %c0_i32_24, %34 : i32
      %c0_i32_25 = arith.constant 0 : i32
      %c0_i32_26 = arith.constant 0 : i32
      %c0_i32_27 = arith.constant 0 : i32
      %40 = tpu.memref_slice %arg3[%38, %c0_i32_27] : memref<64x128xf32, #tpu.memory_space<any>> -> memref<1x128xf32, #tpu.memory_space<any>>
      %41 = tpu.memref_squeeze %40 : memref<1x128xf32, #tpu.memory_space<any>> -> memref<128xf32, #tpu.memory_space<any>>
      %c0_i32_28 = arith.constant 0 : i32
      %42 = tpu.memref_slice %arg8[%39, %c0_i32_28] : memref<16x128xf32, #tpu.memory_space<vmem>> -> memref<1x128xf32, #tpu.memory_space<vmem>>
      %43 = tpu.memref_squeeze %42 : memref<1x128xf32, #tpu.memory_space<vmem>> -> memref<128xf32, #tpu.memory_space<vmem>>
      %44 = tpu.memref_slice %arg9[%c0_i32_25, %c0_i32_26] : memref<2x2x!tpu.dma_semaphore, #tpu.memory_space<semaphore_mem>> -> memref<1x1x!tpu.dma_semaphore, #tpu.memory_space<semaphore_mem>>
      %45 = tpu.memref_squeeze %44 : memref<1x1x!tpu.dma_semaphore, #tpu.memory_space<semaphore_mem>> -> memref<!tpu.dma_semaphore, #tpu.memory_space<semaphore_mem>>
      tpu.enqueue_dma source(%41 : memref<128xf32, #tpu.memory_space<any>>) target(%43 : memref<128xf32, #tpu.memory_space<vmem>>) target_semaphore(%45 : memref<!tpu.dma_semaphore, #tpu.memory_space<semaphore_mem>>)
    }
    %c16_i32_5 = arith.constant 16 : i32
    %c0_i32_6 = arith.constant 0 : i32
    %c16_i32_7 = arith.constant 16 : i32
    %6 = arith.addi %c0_i32_6, %c16_i32_7 : i32
    %c1_i32_8 = arith.constant 1 : i32
    scf.for %arg10 = %c0_i32_6 to %6 step %c1_i32_8  : i32 {
      %c1_i32_21 = arith.constant 1 : i32
      %33 = arith.muli %arg10, %c1_i32_21 : i32
      %c0_i32_22 = arith.constant 0 : i32
      %34 = arith.addi %c0_i32_22, %33 : i32
      %c0_i32_23 = arith.constant 0 : i32
      %35 = arith.addi %c0_i32_23, %34 : i32
      %c0_i32_24 = arith.constant 0 : i32
      %c0_i32_25 = arith.constant 0 : i32
      %c0_i32_26 = arith.constant 0 : i32
      %c0_i32_27 = arith.constant 0 : i32
      %36 = tpu.memref_slice %arg3[%c0_i32_24, %c0_i32_27] : memref<64x128xf32, #tpu.memory_space<any>> -> memref<1x128xf32, #tpu.memory_space<any>>
      %37 = tpu.memref_squeeze %36 : memref<1x128xf32, #tpu.memory_space<any>> -> memref<128xf32, #tpu.memory_space<any>>
      %c0_i32_28 = arith.constant 0 : i32
      %38 = tpu.memref_slice %arg8[%35, %c0_i32_28] : memref<16x128xf32, #tpu.memory_space<vmem>> -> memref<1x128xf32, #tpu.memory_space<vmem>>
      %39 = tpu.memref_squeeze %38 : memref<1x128xf32, #tpu.memory_space<vmem>> -> memref<128xf32, #tpu.memory_space<vmem>>
      %40 = tpu.memref_slice %arg9[%c0_i32_25, %c0_i32_26] : memref<2x2x!tpu.dma_semaphore, #tpu.memory_space<semaphore_mem>> -> memref<1x1x!tpu.dma_semaphore, #tpu.memory_space<semaphore_mem>>
      %41 = tpu.memref_squeeze %40 : memref<1x1x!tpu.dma_semaphore, #tpu.memory_space<semaphore_mem>> -> memref<!tpu.dma_semaphore, #tpu.memory_space<semaphore_mem>>
      tpu.wait_dma2 semaphore(%41 : memref<!tpu.dma_semaphore, #tpu.memory_space<semaphore_mem>>) src(%37 : memref<128xf32, #tpu.memory_space<any>>) dst(%39 : memref<128xf32, #tpu.memory_space<vmem>>)
    }
    %c16_i32_9 = arith.constant 16 : i32
    %c0_10 = arith.constant 0 : index
    %c0_11 = arith.constant 0 : index
    %7 = vector.load %arg8[%c0_10, %c0_11] : memref<16x128xf32, #tpu.memory_space<vmem>>, vector<16x128xf32>
    %c0_12 = arith.constant 0 : index
    %c0_13 = arith.constant 0 : index
    %8 = vector.load %arg4[%c0_12, %c0_13] : memref<16x128xf32, #tpu.memory_space<vmem>>, vector<16x128xf32>
    %9 = arith.addf %7, %8 : vector<16x128xf32>
    %cst = arith.constant dense<0.000000e+00> : vector<16xf32>
    %10 = vector.multi_reduction <add>, %9, %cst [1] : vector<16x128xf32> to vector<16xf32>
    %11 = vector.shape_cast %10 : vector<16xf32> to vector<16x1xf32>
    %cst_14 = arith.constant 1.280000e+02 : f32
    %12 = vector.broadcast %cst_14 : f32 to vector<16x1xf32>
    %13 = arith.divf %11, %12 : vector<16x1xf32>
    %14 = vector.broadcast %13 : vector<16x1xf32> to vector<16x128xf32>
    %15 = arith.subf %9, %14 : vector<16x128xf32>
    %16 = arith.mulf %15, %15 : vector<16x128xf32>
    %cst_15 = arith.constant dense<0.000000e+00> : vector<16xf32>
    %17 = vector.multi_reduction <add>, %16, %cst_15 [1] : vector<16x128xf32> to vector<16xf32>
    %18 = vector.shape_cast %17 : vector<16xf32> to vector<16x1xf32>
    %cst_16 = arith.constant 1.280000e+02 : f32
    %19 = vector.broadcast %cst_16 : f32 to vector<16x1xf32>
    %20 = arith.divf %18, %19 : vector<16x1xf32>
    %cst_17 = arith.constant 9.99999996E-13 : f32
    %21 = vector.broadcast %cst_17 : f32 to vector<16x1xf32>
    %22 = arith.addf %20, %21 : vector<16x1xf32>
    %23 = math.rsqrt %22 : vector<16x1xf32>
    %24 = vector.broadcast %23 : vector<16x1xf32> to vector<16x128xf32>
    %25 = arith.mulf %15, %24 : vector<16x128xf32>
    %26 = vector.broadcast %3 : vector<1x128xf32> to vector<16x128xf32>
    %27 = arith.mulf %25, %26 : vector<16x128xf32>
    %28 = vector.broadcast %4 : vector<1x128xf32> to vector<16x128xf32>
    %29 = arith.addf %27, %28 : vector<16x128xf32>
    %c0_18 = arith.constant 0 : index
    %c0_19 = arith.constant 0 : index
    %c0_20 = arith.constant 0 : index
    %30 = vector.load %arg7[%c0_18, %c0_19, %c0_20] : memref<1x16x128xf32, #tpu.memory_space<vmem>>, vector<1x16x128xf32>
    %31 = vector.shape_cast %30 : vector<1x16x128xf32> to vector<16x128xf32>
    %32 = vector.shape_cast %29 : vector<16x128xf32> to vector<1x16x128xf32>
    tpu.vector_store %arg7[%c0_18, %c0_19, %c0_20], %32 {strides = array<i32>} : memref<1x16x128xf32, #tpu.memory_space<vmem>>, vector<1x16x128xf32>,
    return
  }
  func.func @transform_1(%arg0: i32, %arg1: i32, %arg2: memref<32xi32, #tpu.memory_space<smem>>) -> (i32, i32) {
    %c0_i32 = arith.constant 0 : i32
    %c0_i32_0 = arith.constant 0 : i32
    return %arg0, %c0_i32 : i32, i32
  }
  func.func @transform_2(%arg0: i32, %arg1: i32, %arg2: memref<32xi32, #tpu.memory_space<smem>>) -> (i32, i32) {
    %c0_i32 = arith.constant 0 : i32
    %c0_i32_0 = arith.constant 0 : i32
    %c0_i32_1 = arith.constant 0 : i32
    return %c0_i32, %c0_i32_0 : i32, i32
  }
  func.func @transform_3(%arg0: i32, %arg1: i32, %arg2: memref<32xi32, #tpu.memory_space<smem>>) -> (i32, i32) {
    %c0_i32 = arith.constant 0 : i32
    %c0_i32_0 = arith.constant 0 : i32
    %c0_i32_1 = arith.constant 0 : i32
    return %c0_i32, %c0_i32_0 : i32, i32
  }
  func.func @transform_4(%arg0: i32, %arg1: i32, %arg2: memref<32xi32, #tpu.memory_space<smem>>) -> (i32, i32, i32) {
    %c0_i32 = arith.constant 0 : i32
    %c0_i32_0 = arith.constant 0 : i32
    return %arg1, %arg0, %c0_i32 : i32, i32, i32
  }
}

</mosaic_0001>

<llo_original>
// kernel: flexbert_embeddings.1
$region0: #{flexbert_embeddings.1}
  #allocation0 [shape = 'u32[]', space=smem, size = 0x4, offset = 0x4, fixed_abs, tag = 'smem constant byte address 0x4 - core index']
  #allocation1 [shape = 'u32[144,128]{1,0:T(1,128)}', space=vmem, size = 0x12000, scoped, tag = 'internal scratch']
  #allocation2 [shape = 'f32[16,128]{1,0:T(8,128)}', space=vmem, size = 0x2000, scoped, tag = 'scratch operand']
  #allocation3 [shape = 's32[4]{0}', space=sflag, size = 0x10, scoped, tag = 'scratch operand']
  #allocation4 [shape = 's32[1]{0}', space=sflag, size = 0x4, scoped, tag = 'scoped memory for flexbert_embeddings.1']
  #allocation5 [shape = 'u8[512]{0}', space=smem, size = 0x200, scoped, tag = 'prefetched SMEM operand 0']
  #allocation10 [shape = 's32[]', space=sflag, size = 0x4, offset = 0, fixed_abs, tag = 'sflag constant byte address 0x0 - dummy sync flag']
  #allocation11 [shape = 's32[]', space=sflag, size = 0x4, offset = 0, fixed_abs, tag = 'sflag constant byte address 0x0 - dummy sync flag']
  #allocation12 [shape = 'u32[]', space=smem, size = 0x4, offset = 0x44, fixed_abs, tag = 'smem constant byte address 0x44 - assertion arg 0']
  #allocation13 [shape = 'u32[]', space=smem, size = 0x4, offset = 0x48, fixed_abs, tag = 'smem constant byte address 0x48 - assertion arg 1']
  %s0 = inlined_call_operand.vmem [shape: s32[32], index: 0, kind: input, shape index: {}]
  %s1 = inlined_call_operand.hbm [shape: f32[64,128], index: 1, kind: input, shape index: {}]
  %s2 = inlined_call_operand.hbm [shape: f32[32,128], index: 2, kind: input, shape index: {}]
  %s3 = inlined_call_operand.vmem [shape: f32[1,128], index: 3, kind: input, shape index: {}]
  %s4 = inlined_call_operand.vmem [shape: f32[1,128], index: 4, kind: input, shape index: {}]
  %s5 = inlined_call_operand.hbm [shape: f32[2,8,128], index: 5, kind: output, shape index: {}]
  %s6 = sld [smem:[#allocation0]]
  $region67: #{flexbert_embeddings.1} parent=0
    _
  %s8 = ssub.s32 1, %s6
  %s9 = scalar_select 0, %s8, %s6
  %s10 = sshll.u32 %s0, 4
  %s11 = int_to_ptr.vmem [resolvable:$true] %s10
  %13 = dma.vmem_to_smem %s11, 16, [#allocation5], [#allocation4]
  %14 = dma.done [#allocation4], 16
  %15 = sfence
  $region1: #{flexbert_embeddings.1} parent=0
    #allocation6 [shape = 'u8[8192]{0}', space=vmem, size = 0x2000, scoped, tag = 'input window, operand 2, single buffered']
    #allocation7 [shape = 's32[2]{0}', space=sflag, size = 0x8, scoped, tag = 'scoped memory for flexbert_embeddings.1']
    #allocation8 [shape = 's32[2]{0}', space=sflag, size = 0x8, scoped, tag = 'scoped memory for flexbert_embeddings.1']
    #allocation9 [shape = 'u8[16384]{0}', space=vmem, size = 0x4000, scoped, tag = 'output window, operand 0']
    %16 = vsyncpa [#allocation7], 0
    %17 = vsyncpa [#allocation8], 0
    %s18 = scalar_lea.sflag [#allocation8], 1
    %19 = vsyncpa %s18, 0
    loop: start=0, step=1, limit=4
    $region2: #{flexbert_embeddings.1} parent=1 // loop_pre_header
      _
    $region3: #{flexbert_embeddings.1} parent=1 // loop_header
      %s21 = sphi 0, %s25
      %p22 = scmp.ge.s32.totalorder %s21, 4
      %s28 = sphi 0, %s40
      %s29 = sphi 0, %s36
      %s30 = sphi 0, %s28
      %s31 = sphi 0, %s29
      %s32 = sphi 0, %s30
      %s33 = sphi 0, %s31
      %s43 = sphi 0, %s45
      %s46 = sphi 0, %s43
      %s47 = sphi 0, %s46
      %s63 = sphi 0, %s47
      %s67 = sphi 0, %s67
      %s69 = sphi 0, %s67
      %s70 = sphi 0, %s69
      %s84 = sphi 0, %s70
      %s88 = sphi 0, %s88
      %s90 = sphi 0, %s88
      %s91 = sphi 0, %s90
      %s105 = sphi 0, %s91
      %s113 = sphi 0, %s115
      %s116 = sphi 0, %s113
      %s117 = sphi 0, %s116
      %s133 = sphi 0, %s117
    $region4: #{flexbert_embeddings.1} parent=1 // loop_header_branch
      %24 = sbr.rel (%p22) target = $region8
    $region5: #{flexbert_embeddings.1} parent=1 // loop_body
      %s26 = ssub.s32 %s21, 1
      %s27 = ssub.s32 %s21, 2
      %s34 = sadd.s32 1, %s29
      %p35 = scmp.ge.s32.totalorder %s34, 2
      %s36 = scalar_select %p35, 0, %s34
      %s37 = sadd.s32 1, %s28
      %s38 = scalar_select %p35, %s37, %s28
      %p39 = scmp.ge.s32.totalorder %s38, 1
      %s40 = scalar_select %p39, 0, %s38
      %s41 = ssub.s32 %s28, %s40
      %p42 = scmp.eq.s32.totalorder %s41, 0
      %s44 = sadd.s32 %s43, 1
      %s45 = scalar_select %p42, %s43, %s44
      %p48 = pneg %p42
      %p49 = scmp.eq.s32.totalorder %s21, 1
      %p50 = por %p48, %p49
      %p51 = scmp.ne.s32.totalorder %s43, %s46
      %p52 = scmp.eq.s32.totalorder %s21, 0
      %p53 = por %p51, %p52
      %p54 = scmp.ne.s32.totalorder %s43, %s46
      %p55 = scmp.eq.s32.totalorder %s26, 1
      %p56 = por %p54, %p55
      %p57 = scmp.ne.s32.totalorder %s46, %s47
      %p58 = scmp.eq.s32.totalorder %s26, 0
      %p59 = por %p57, %p58
      %p60 = scmp.ne.s32.totalorder %s46, %s47
      %p61 = scmp.eq.s32.totalorder %s27, 1
      %p62 = por %p60, %p61
      %p64 = scmp.ne.s32.totalorder %s47, %s63
      %p65 = scmp.eq.s32.totalorder %s27, 0
      %p66 = por %p64, %p65
      %s68 = sadd.s32 %s67, 1
      %p71 = scmp.eq.s32.totalorder %s21, 1
      %p72 = scmp.ne.s32.totalorder %s67, %s69
      %p73 = scmp.eq.s32.totalorder %s21, 0
      %p74 = por %p72, %p73
      %p75 = scmp.ne.s32.totalorder %s67, %s69
      %p76 = scmp.eq.s32.totalorder %s26, 1
      %p77 = por %p75, %p76
      %p78 = scmp.ne.s32.totalorder %s69, %s70
      %p79 = scmp.eq.s32.totalorder %s26, 0
      %p80 = por %p78, %p79
      %p81 = scmp.ne.s32.totalorder %s69, %s70
      %p82 = scmp.eq.s32.totalorder %s27, 1
      %p83 = por %p81, %p82
      %p85 = scmp.ne.s32.totalorder %s70, %s84
      %p86 = scmp.eq.s32.totalorder %s27, 0
      %p87 = por %p85, %p86
      %s89 = sadd.s32 %s88, 1
      %p92 = scmp.eq.s32.totalorder %s21, 1
      %p93 = scmp.ne.s32.totalorder %s88, %s90
      %p94 = scmp.eq.s32.totalorder %s21, 0
      %p95 = por %p93, %p94
      %p96 = scmp.ne.s32.totalorder %s88, %s90
      %p97 = scmp.eq.s32.totalorder %s26, 1
      %p98 = por %p96, %p97
      %p99 = scmp.ne.s32.totalorder %s90, %s91
      %p100 = scmp.eq.s32.totalorder %s26, 0
      %p101 = por %p99, %p100
      %p102 = scmp.ne.s32.totalorder %s90, %s91
      %p103 = scmp.eq.s32.totalorder %s27, 1
      %p104 = por %p102, %p103
      %p106 = scmp.ne.s32.totalorder %s91, %s105
      %p107 = scmp.eq.s32.totalorder %s27, 0
      %p108 = por %p106, %p107
      %s109 = ssub.s32 %s29, %s36
      %s110 = ssub.s32 %s28, %s40
      %s111 = sor.u32 %s109, %s110
      %p112 = scmp.eq.s32.totalorder %s111, 0
      %s114 = sadd.s32 %s113, 1
      %s115 = scalar_select %p112, %s113, %s114
      %p118 = pneg %p112
      %p119 = scmp.eq.s32.totalorder %s21, 1
      %p120 = por %p118, %p119
      %p121 = scmp.ne.s32.totalorder %s113, %s116
      %p122 = scmp.eq.s32.totalorder %s21, 0
      %p123 = por %p121, %p122
      %p124 = scmp.ne.s32.totalorder %s113, %s116
      %p125 = scmp.eq.s32.totalorder %s26, 1
      %p126 = por %p124, %p125
      %p127 = scmp.ne.s32.totalorder %s116, %s117
      %p128 = scmp.eq.s32.totalorder %s26, 0
      %p129 = por %p127, %p128
      %p130 = scmp.ne.s32.totalorder %s116, %s117
      %p131 = scmp.eq.s32.totalorder %s27, 1
      %p132 = por %p130, %p131
      %p134 = scmp.ne.s32.totalorder %s117, %s133
      %p135 = scmp.eq.s32.totalorder %s27, 0
      %p136 = por %p134, %p135
      %p137 = scmp.le.s32.totalorder 1, %s21
      %p138 = scmp.lt.s32.totalorder %s21, 3
      %p139 = pnand %p137, %p138
      %p140 = pneg %p139
      // Predicated region
      $region9: #{flexbert_embeddings.1} parent=5 // pred_check
        _
      $region10: #{flexbert_embeddings.1} parent=5 // pred_check_branch
        %142 = sbr.rel (%p139) target = $region12
      $region11: #{flexbert_embeddings.1} parent=5 // pred_region
        %s143 = ssub.s32 %s21, 1
        // Predicated region
        $region13: #{flexbert_embeddings.1} parent=11 // pred_check
          %p144 = pneg %p59
        $region14: #{flexbert_embeddings.1} parent=11 // pred_check_branch
          %146 = sbr.rel (%p144) target = $region16
        $region15: #{flexbert_embeddings.1} parent=11 // pred_region
          %s147 = smul.u32 2, %s30
          %s149 = ssub.s32 256, 256
          %150 = vsyncadd [#allocation7], %s149
          %s151 = smul.addr %s147, 128
          %s152 = scalar_lea.hbm %s2, %s151
          %s153 = sshll.u32 [#allocation6], 4
          %s154 = int_to_ptr.vmem [resolvable:$true] %s153
          %159 = dma.hbm_to_vmem [thread:$0]  %s152, 256, %s154, [#allocation7], 128, 128, 8
        $region16: #{flexbert_embeddings.1} parent=11 // pred_fallthru
          _
        // Predicated region
        $region17: #{flexbert_embeddings.1} parent=11 // pred_check
          %p160 = pneg %p80
        $region18: #{flexbert_embeddings.1} parent=11 // pred_check_branch
          %162 = sbr.rel (%p160) target = $region20
        $region19: #{flexbert_embeddings.1} parent=11 // pred_region
          _
        $region20: #{flexbert_embeddings.1} parent=11 // pred_fallthru
          _
        // Predicated region
        $region21: #{flexbert_embeddings.1} parent=11 // pred_check
          %p163 = pneg %p101
        $region22: #{flexbert_embeddings.1} parent=11 // pred_check_branch
          %165 = sbr.rel (%p163) target = $region24
        $region23: #{flexbert_embeddings.1} parent=11 // pred_region
          _
        $region24: #{flexbert_embeddings.1} parent=11 // pred_fallthru
          _
      $region12: #{flexbert_embeddings.1} parent=5 // pred_fallthru
        _
      %p166 = scmp.lt.s32.totalorder %s21, 2
      // Predicated region
      $region25: #{flexbert_embeddings.1} parent=5 // pred_check
        %p167 = pneg %p166
      $region26: #{flexbert_embeddings.1} parent=5 // pred_check_branch
        %169 = sbr.rel (%p167) target = $region28
      $region27: #{flexbert_embeddings.1} parent=5 // pred_region
        _
      $region28: #{flexbert_embeddings.1} parent=5 // pred_fallthru
        _
      %p170 = scmp.le.s32.totalorder 1, %s21
      %p171 = scmp.lt.s32.totalorder %s21, 3
      %p172 = pnand %p170, %p171
      %p173 = pneg %p172
      // Predicated region
      $region29: #{flexbert_embeddings.1} parent=5 // pred_check
        _
      $region30: #{flexbert_embeddings.1} parent=5 // pred_check_branch
        %175 = sbr.rel (%p172) target = $region32
      $region31: #{flexbert_embeddings.1} parent=5 // pred_region
        %s176 = ssub.s32 %s21, 1
        // Predicated region
        $region33: #{flexbert_embeddings.1} parent=31 // pred_check
          %p177 = pneg %p59
        $region34: #{flexbert_embeddings.1} parent=31 // pred_check_branch
          %179 = sbr.rel (%p177) target = $region36
        $region35: #{flexbert_embeddings.1} parent=31 // pred_region
          %180 = dma.done [#allocation7], 256
        $region36: #{flexbert_embeddings.1} parent=31 // pred_fallthru
          _
        %p181 = pneg %p59
        %p182 = pneg %p56
        %p183 = pneg %p80
        %p184 = pneg %p77
        %p185 = pneg %p101
        %p186 = pneg %p98
        %p187 = pneg %p129
        %p188 = pneg %p126
        %s189 = sand.u32 %s116, 1
        %s190 = scalar_lea.sflag [#allocation8], %s189
        %s191 = sand.u32 %s116, 1
        %s192 = smul.addr %s191, 16
        %s193 = scalar_lea.vmem [#allocation9], %s192
        %s194 = smul.u32 2, %s30
        %s195 = smul.u32 2, %s30
        %s196 = ssub.s32 1, %s195
        %s197 = smul.u32 128, %s196
        %s198 = smul.u32 %s31, 16
        %s199 = smul.u32 %s30, 16
        %s200 = sadd.s32 %s198, %s199
        %v201 = vld [vmem:[%s3] sm:$0x1]
        %v202 = vld [vmem:[%s4] sm:$0x1]
        loop: start=0, step=1, limit=16
        $region37: #{flexbert_embeddings.1} parent=31 // loop_pre_header
          _
        $region38: #{flexbert_embeddings.1} parent=31 // loop_header
          %s204 = sphi 0, %s208
          %p205 = scmp.ge.s32.totalorder %s204, 16
        $region39: #{flexbert_embeddings.1} parent=31 // loop_header_branch
          %207 = sbr.rel (%p205) target = $region43
        $region40: #{flexbert_embeddings.1} parent=31 // loop_body
          %s209 = sadd.s32 %s200, %s204
          %s210 = sld [smem:[#allocation5 + %s209]]
          %s211 = smul.addr %s210, 16
          %s212 = scalar_lea.hbm %s1, %s211
          %s213 = scalar_lea.vmem [#allocation2], %s204
          // Predicated region
          $region44: #{flexbert_embeddings.1} parent=40 // pred_check
            _
          $region45: #{flexbert_embeddings.1} parent=40 // pred_check_branch
            %215 = sbr.rel target = $region47
          $region46: #{flexbert_embeddings.1} parent=40 // pred_region
            %216 = sst [smem:[#allocation12]] [#allocation11]
            %217 = sst [smem:[#allocation13]] [#allocation10]
          $region47: #{flexbert_embeddings.1} parent=40 // pred_fallthru
            _
          %219 = shalt.err (0)
          %s221 = sshll.u32 %s213, 4
          %s222 = int_to_ptr.vmem [resolvable:$true] %s221
          %224 = dma.hbm_to_vmem [thread:$0]  %s212, 16, %s222, [#allocation3]
        $region41: #{flexbert_embeddings.1} parent=31 // loop_footer
          %s208 = sadd.s32 1, %s204
        $region42: #{flexbert_embeddings.1} parent=31 // loop_footer_branch
          %203 = sbr.rel target = $region38
        $region43: #{flexbert_embeddings.1} parent=31 // loop_exit
          _
        loop: start=0, step=1, limit=16
        $region48: #{flexbert_embeddings.1} parent=31 // loop_pre_header
          _
        $region49: #{flexbert_embeddings.1} parent=31 // loop_header
          %s226 = sphi 0, %s230
          %p227 = scmp.ge.s32.totalorder %s226, 16
        $region50: #{flexbert_embeddings.1} parent=31 // loop_header_branch
          %229 = sbr.rel (%p227) target = $region54
        $region51: #{flexbert_embeddings.1} parent=31 // loop_body
          %232 = dma.done [#allocation3], 16
        $region52: #{flexbert_embeddings.1} parent=31 // loop_footer
          %s230 = sadd.s32 1, %s226
        $region53: #{flexbert_embeddings.1} parent=31 // loop_footer_branch
          %225 = sbr.rel target = $region49
        $region54: #{flexbert_embeddings.1} parent=31 // loop_exit
          _
        %v233 = vld [vmem:[#allocation2] sm:$0xff]
        %v234 = vld [vmem:[#allocation2 + $0x8] sm:$0xff]
        %v235 = vld [vmem:[#allocation6] sm:$0xff]
        %v236 = vld [vmem:[#allocation6 + $0x8] sm:$0xff]
        %v237 = vadd.f32 %v233, %v235
        %v238 = vadd.f32 %v234, %v236
        %239 = vadd.xlane.f32.xlu0 %v237
        %v240 = vpop.xlane.xlu0 %239
        %241 = vadd.xlane.f32.xlu0 %v238
        %v242 = vpop.xlane.xlu0 %241
        %v243 = vrcp.pop 128.0
        %v244 = vmul.f32 %v240, %v243
        %v245 = vmul.f32 %v242, %v243
        %v246 = vsub.f32 %v237, %v244
        %v247 = vsub.f32 %v238, %v245
        %v248 = vmul.f32 %v246, %v246
        %v249 = vmul.f32 %v247, %v247
        %250 = vadd.xlane.f32.xlu0 %v248
        %v251 = vpop.xlane.xlu0 %250
        %252 = vadd.xlane.f32.xlu0 %v249
        %v253 = vpop.xlane.xlu0 %252
        %v254 = vmul.f32 %v251, %v243
        %v255 = vmul.f32 %v253, %v243
        %v256 = vadd.f32 %v254, 1e-12
        %v257 = vadd.f32 %v255, 1e-12
        %v258 = vrsqrt.pop %v256
        %v259 = vrsqrt.pop %v257
        %v260 = vmul.f32 %v246, %v258
        %v261 = vmul.f32 %v247, %v259
        %v263 = vlaneseq
        %v264 = vshrl.u32 %v263, 7
        %v265 = vsub.s32 0, %v264
        %v266 = vrot.slane %v201, %v265
        %v268 = vmul.f32 %v260, %v266
        %v269 = vmul.f32 %v261, %v266
        %v271 = vlaneseq
        %v272 = vshrl.u32 %v271, 7
        %v273 = vsub.s32 0, %v272
        %v274 = vrot.slane %v202, %v273
        %v276 = vadd.f32 %v268, %v274
        %v277 = vadd.f32 %v269, %v274
        %278 = vst [vmem:[%s193] sm:$0xff] %v276
        %279 = vst [vmem:[%s193 + $0x8] sm:$0xff] %v277
        %s280 = sand.u32 %s116, 1
        %s281 = scalar_lea.sflag [#allocation8], %s280
        %s282 = sand.u32 %s116, 1
        %s283 = smul.addr %s282, 16
        %s284 = scalar_lea.vmem [#allocation9], %s283
        // Predicated region
        $region55: #{flexbert_embeddings.1} parent=31 // pred_check
          %p285 = pneg %p126
        $region56: #{flexbert_embeddings.1} parent=31 // pred_check_branch
          %287 = sbr.rel (%p285) target = $region58
        $region57: #{flexbert_embeddings.1} parent=31 // pred_region
          %s288 = smul.u32 2, %s30
          %s289 = ssub.s32 1, %s288
          %s290 = smul.u32 128, %s289
          %s292 = ssub.s32 256, %s290
          %293 = vsyncadd %s281, %s292
          %p294 = scmp.ne.s32.totalorder 0, %s290
          %s295 = sadd.s32 %s288, %s31
          %s296 = smul.addr %s295, 128
          %s297 = scalar_lea.hbm %s5, %s296
          %s298 = smul.u32 8, %s289
          %s299 = sshll.u32 %s284, 4
          %s300 = int_to_ptr.vmem [resolvable:$true] %s299
          %s301 = sshll.u32 %s298, 4
          %305 = dma.vmem_to_hbm [thread:$0]  (%p294), %s300, %s301, %s297, %s281, 128, 128, 8
        $region58: #{flexbert_embeddings.1} parent=31 // pred_fallthru
          _
      $region32: #{flexbert_embeddings.1} parent=5 // pred_fallthru
        _
      %p306 = scmp.le.s32.totalorder 2, %s21
      // Predicated region
      $region59: #{flexbert_embeddings.1} parent=5 // pred_check
        %p307 = pneg %p306
      $region60: #{flexbert_embeddings.1} parent=5 // pred_check_branch
        %309 = sbr.rel (%p307) target = $region62
      $region61: #{flexbert_embeddings.1} parent=5 // pred_region
        %s310 = ssub.s32 %s21, 2
        // Predicated region
        $region63: #{flexbert_embeddings.1} parent=61 // pred_check
          %p311 = pneg %p132
        $region64: #{flexbert_embeddings.1} parent=61 // pred_check_branch
          %313 = sbr.rel (%p311) target = $region66
        $region65: #{flexbert_embeddings.1} parent=61 // pred_region
          %s314 = sand.u32 %s117, 1
          %s315 = scalar_lea.sflag [#allocation8], %s314
          %s316 = sand.u32 %s117, 1
          %s317 = smul.addr %s316, 16
          %s318 = scalar_lea.vmem [#allocation9], %s317
          %319 = dma.done %s315, 256
        $region66: #{flexbert_embeddings.1} parent=61 // pred_fallthru
          _
      $region62: #{flexbert_embeddings.1} parent=5 // pred_fallthru
        _
    $region6: #{flexbert_embeddings.1} parent=1 // loop_footer
      %s25 = sadd.s32 1, %s21
    $region7: #{flexbert_embeddings.1} parent=1 // loop_footer_branch
      %20 = sbr.rel target = $region3
    $region8: #{flexbert_embeddings.1} parent=1 // loop_exit
      _
    %320 = vsyncpa [#allocation7], 1
    %s321 = scalar_lea.sflag [#allocation7], 1
    %322 = vsyncpa %s321, 1
    %323 = vsyncpa [#allocation8], 1
    %s324 = scalar_lea.sflag [#allocation8], 1
    %325 = vsyncpa %s324, 1
  %326 = vsyncmov [#allocation3]
  %s327 = vpop.sfrf %326
  %p328 = scmp.eq.s32.totalorder %s327, 0
  %p329 = pneg %p328
  %331 = shalt.err (%p329)
  %s332 = scalar_lea.sflag [#allocation3], 1
  %333 = vsyncmov %s332
  %s334 = vpop.sfrf %333
  %p335 = scmp.eq.s32.totalorder %s334, 0
  %p336 = pneg %p335
  %338 = shalt.err (%p336)
  %s339 = scalar_lea.sflag [#allocation3], 2
  %340 = vsyncmov %s339
  %s341 = vpop.sfrf %340
  %p342 = scmp.eq.s32.totalorder %s341, 0
  %p343 = pneg %p342
  %345 = shalt.err (%p343)
  %s346 = scalar_lea.sflag [#allocation3], 3
  %347 = vsyncmov %s346
  %s348 = vpop.sfrf %347
  %p349 = scmp.eq.s32.totalorder %s348, 0
  %p350 = pneg %p349
  %352 = shalt.err (%p350)

</llo_original>
